<compile_context>
chip_gen: v7x
topology: tpu7x:2x2x1
jax: 0.10.0
libtpu: 0.0.40
codegen_flags: <defaults>
</compile_context>

<pallas_src>
import math
import functools

import jax
import jax.numpy as jnp
from jax.experimental import pallas as pl
from jax.experimental.pallas import tpu as pltpu

# ---- config matching DensityAndFeaturesMLP(hidden_dim=64, data_format='colmap') ----
NUM_LEVELS = 20
LEVEL_DIM = 2
IN_DIM = NUM_LEVELS * LEVEL_DIM          # 40
HIDDEN = 64
FEAT_DIM = 7
OUT_DIM = FEAT_DIM + 1                   # merged [features | density] output
BASE_RES = 16
DESIRED_RES = 8192 + 1
LOG2_HASHMAP = 12                        # demo-sized table (module uses 21); same semantics
TABLE_SIZE = 1 << LOG2_HASHMAP

_PRIMES = jnp.array([1, 2654435761, 805459861], dtype=jnp.uint32)


def _round_up(x, m):
    return ((x + m - 1) // m) * m


def _choose_tile(n, max_tile=8192, min_tile=256, target_steps=8):
    """Row-tile selection.

    Small N: one step covering the whole problem (rounded to a sublane-friendly
    multiple).  Large N: tiles of >= 8192 rows so the ~0.35 us per-grid-step
    overhead is well under the step's HBM time, capped at `max_tile` so the
    per-step VMEM footprint stays inside the explicit vmem_limit_bytes budget,
    and sized so the grid keeps several steps (v7x megacore gets both TCs busy).
    """
    tile = _round_up(max(n, 1), min_tile)
    if tile > max_tile:
        per_step = _round_up(pl.cdiv(n, target_steps), min_tile)
        tile = max(8192, min(max_tile, per_step))
    return tile


# ------------------------- Pallas kernel: fused MLP stack -------------------------
# h = relu(x @ W1)  (bf16 inputs, f32 MXU accumulation);
# out = h @ [W3 | W2]  -> single [tile, 8] bf16 store (features | density).
def fused_mlp_kernel(x_ref, w1_ref, wc_ref, out_ref):
    h = jnp.maximum(
        jnp.dot(x_ref[...], w1_ref[...], preferred_element_type=jnp.float32), 0.0)
    out = jnp.dot(h.astype(wc_ref.dtype), wc_ref[...],
                  preferred_element_type=jnp.float32)
    out_ref[...] = out.astype(out_ref.dtype)


def fused_mlp(x_enc, w1, w2, w3, max_tile=8192):
    """x_enc: [N, 40] (any float dtype, bf16 preferred).  Returns (features, density)."""
    n = x_enc.shape[0]

    # Merge the two near-degenerate tail matmuls into one [HIDDEN, 8] GEMM.
    wc = jnp.concatenate([w3, w2], axis=1)                       # [64, 8]

    # bf16 inputs, f32 accumulation: halves the dominant HBM read of x_enc.
    x_bf = x_enc if x_enc.dtype == jnp.bfloat16 else x_enc.astype(jnp.bfloat16)
    w1_bf = w1.astype(jnp.bfloat16)
    wc_bf = wc.astype(jnp.bfloat16)

    tile = _choose_tile(n, max_tile=max_tile)
    # Non-divisible grid: Pallas clips the ragged last block's DMAs.  The extra
    # rows in that block read unspecified data and their outputs are discarded;
    # this is safe because every output row depends only on its own input row.
    grid = pl.cdiv(n, tile)

    cost = pl.CostEstimate(
        flops=2 * n * (IN_DIM * HIDDEN + HIDDEN * OUT_DIM),
        transcendentals=0,
        bytes_accessed=(n * IN_DIM * 2 + n * OUT_DIM * 2          # bf16 in/out streams
                        + IN_DIM * HIDDEN * 2 + HIDDEN * OUT_DIM * 2),
    )

    out = pl.pallas_call(
        fused_mlp_kernel,
        out_shape=jax.ShapeDtypeStruct((n, OUT_DIM), jnp.bfloat16),
        grid_spec=pltpu.PrefetchScalarGridSpec(
            num_scalar_prefetch=0,
            grid=(grid,),
            in_specs=[
                pl.BlockSpec((tile, IN_DIM), lambda i: (i, 0)),
                pl.BlockSpec((IN_DIM, HIDDEN), lambda i: (0, 0)),
                pl.BlockSpec((HIDDEN, OUT_DIM), lambda i: (0, 0)),
            ],
            out_specs=pl.BlockSpec((tile, OUT_DIM), lambda i: (i, 0)),
        ),
        compiler_params=pltpu.CompilerParams(
            dimension_semantics=("parallel",),
            # tile=8192 needs ~20 MiB of double-buffers + intermediates:
            # above v5e's 16 MiB default scoped limit, comfortably under
            # v7x's 64 MiB physical.  (16384-row tiles are fine on the
            # 128 MiB v5e/v6e parts with this limit raised further.)
            vmem_limit_bytes=48 << 20,
        ),
        cost_estimate=cost,
    )(x_bf, w1_bf, wc_bf)

    return out[:, :FEAT_DIM], out[:, FEAT_DIM:]     # features [N,7], density [N,1]


# ------------------------- hash-grid encoder (plain JAX glue) -------------------------
# TODO(synk): fuse the hash-grid gather into the Pallas kernel.  At the demo
# LOG2_HASHMAP=12 all 20 tables (~640 KiB) fit in VMEM and could be passed as
# untiled VMEM inputs with the 8-corner trilinear gather done in-kernel; at the
# production 2^21 size the fine levels must stay in HBM behind
# memory_space=pl.ANY + manual make_async_copy gathers.  Kept in plain JAX here.
def _level_resolutions():
    per_level_scale = math.exp(math.log(DESIRED_RES / BASE_RES) / (NUM_LEVELS - 1))
    return [int(math.ceil(BASE_RES * per_level_scale ** l)) for l in range(NUM_LEVELS)]


def hashgrid_encode(pos01, tables, resolutions):
    """pos01: [N, 3] in [0, 1]; tables: [NUM_LEVELS, TABLE_SIZE, LEVEL_DIM].

    Returns x_enc in bf16 so the MLP kernel's dominant HBM read is already
    half-width and no separate f32->bf16 HBM pass is needed.
    """
    n = pos01.shape[0]
    outs = []
    for l in range(NUM_LEVELS):
        res = resolutions[l]
        table = tables[l]
        p = pos01 * (res - 1)
        p0 = jnp.floor(p)
        w = p - p0                       # trilinear weights, [N, 3]
        p0u = p0.astype(jnp.uint32)
        acc = jnp.zeros((n, LEVEL_DIM), jnp.float32)
        for corner in range(8):
            offs = jnp.array([(corner >> d) & 1 for d in range(3)], dtype=jnp.uint32)
            c = p0u + offs[None, :]
            hc = c * _PRIMES[None, :]
            idx = (hc[:, 0] ^ hc[:, 1] ^ hc[:, 2]) & jnp.uint32(TABLE_SIZE - 1)
            weight = jnp.prod(jnp.where(offs[None, :] == 1, w, 1.0 - w), axis=1)
            acc = acc + weight[:, None] * table[idx.astype(jnp.int32)]
        outs.append(acc.astype(jnp.bfloat16))
    return jnp.concatenate(outs, axis=1)     # [N, IN_DIM] bf16


# ------------------------- deterministic parameter init -------------------------
def kaiming_uniform_T(key, fan_in, fan_out):
    # matches nn.init.kaiming_uniform_ on a [out, in] weight; returned transposed [in, out]
    bound = math.sqrt(6.0 / fan_in)
    w = jax.random.uniform(key, (fan_out, fan_in), jnp.float32, -bound, bound)
    return w.T


def density_and_features_forward(positions, bound, tables, w1, w2, w3, resolutions):
    pos01 = (positions + bound) / (2.0 * bound)
    x_enc = hashgrid_encode(pos01, tables, resolutions)
    features, density = fused_mlp(x_enc, w1, w2, w3)
    return features, density, x_enc


if __name__ == "__main__":
    key = jax.random.PRNGKey(0)
    k_pos, k_tab, k1, k2, k3 = jax.random.split(key, 5)

    N = 256
    bound = 2.0
    positions = jax.random.uniform(k_pos, (N, 3), jnp.float32, -bound, bound)

    # hash embedding table, uniform(-1e-4, 1e-4) like torch-ngp gridencoder
    tables = jax.random.uniform(k_tab, (NUM_LEVELS, TABLE_SIZE, LEVEL_DIM),
                                jnp.float32, -1e-4, 1e-4)
    # DensityAndFeaturesMLP passes bias=False to all three MLPs, so no bias terms.
    w1 = kaiming_uniform_T(k1, IN_DIM, HIDDEN)    # self.mlp      : in_dim -> hidden
    w2 = kaiming_uniform_T(k2, HIDDEN, 1)         # density_mlp   : hidden -> 1
    w3 = kaiming_uniform_T(k3, HIDDEN, FEAT_DIM)  # feature_mlp   : hidden -> 7

    resolutions = tuple(_level_resolutions())
    fwd = jax.jit(functools.partial(density_and_features_forward,
                                    resolutions=resolutions))
    features, density, x_enc = fwd(positions, bound, tables, w1, w2, w3)
    jax.block_until_ready((features, density))

    # sanity check vs a plain-JAX reference of the same bf16-in / f32-accumulate
    # / bf16-out math
    xb = x_enc.astype(jnp.bfloat16)
    w1b = w1.astype(jnp.bfloat16)
    h_ref = jnp.maximum(jnp.dot(xb, w1b, preferred_element_type=jnp.float32), 0.0)
    hb = h_ref.astype(jnp.bfloat16)
    feat_ref = jnp.dot(hb, w3.astype(jnp.bfloat16),
                       preferred_element_type=jnp.float32).astype(jnp.bfloat16)
    dens_ref = jnp.dot(hb, w2.astype(jnp.bfloat16),
                       preferred_element_type=jnp.float32).astype(jnp.bfloat16)

    assert features.shape == (N, FEAT_DIM) and density.shape == (N, 1)
    assert jnp.allclose(features.astype(jnp.float32), feat_ref.astype(jnp.float32),
                        rtol=2e-2, atol=1e-6), "features mismatch"
    assert jnp.allclose(density.astype(jnp.float32), dens_ref.astype(jnp.float32),
                        rtol=2e-2, atol=1e-6), "density mismatch"

    print("KERNEL_OK")
</pallas_src>

<mosaic_0001>
module attributes {stable_mosaic.version = 11 : i64} {
  func.func @fused_mlp_kernel(%arg0: i32, %arg1: memref<256x40xbf16, #tpu.memory_space<vmem>>, %arg2: memref<40x64xbf16, #tpu.memory_space<vmem>>, %arg3: memref<64x8xbf16, #tpu.memory_space<vmem>>, %arg4: memref<256x8xbf16, #tpu.memory_space<vmem>>) attributes {dimension_semantics = [#tpu.dimension_semantics<parallel>], iteration_bounds = array<i64: 1>, scalar_prefetch = 0 : i64, scratch_operands = 0 : i64, tpu.core_type = #tpu.core_type<tc>, window_params = [{transform_indices = @transform_0, window_bounds = array<i64: 256, 40>}, {pipeline_mode = #tpu.pipeline_mode<synchronous>, transform_indices = @transform_1, window_bounds = array<i64: 40, 64>}, {pipeline_mode = #tpu.pipeline_mode<synchronous>, transform_indices = @transform_2, window_bounds = array<i64: 64, 8>}, {transform_indices = @transform_3, window_bounds = array<i64: 256, 8>}]} {
    %c0 = arith.constant 0 : index
    %c0_0 = arith.constant 0 : index
    %0 = vector.load %arg1[%c0, %c0_0] : memref<256x40xbf16, #tpu.memory_space<vmem>>, vector<256x40xbf16>
    %c0_1 = arith.constant 0 : index
    %c0_2 = arith.constant 0 : index
    %1 = vector.load %arg2[%c0_1, %c0_2] : memref<40x64xbf16, #tpu.memory_space<vmem>>, vector<40x64xbf16>
    %cst = arith.constant dense<0.000000e+00> : vector<256x64xf32>
    %2 = tpu.matmul %0, %1, %cst {dimension_numbers = #tpu.dot_dimension_numbers<[1], [0], [0], [1], [0, 0, 1, 1], [], []>} : vector<256x40xbf16>, vector<40x64xbf16>, vector<256x64xf32> -> vector<256x64xf32>
    %cst_3 = arith.constant 0.000000e+00 : f32
    %3 = vector.broadcast %cst_3 : f32 to vector<256x64xf32>
    %4 = arith.maximumf %2, %3 : vector<256x64xf32>
    %5 = arith.truncf %4 : vector<256x64xf32> to vector<256x64xbf16>
    %c0_4 = arith.constant 0 : index
    %c0_5 = arith.constant 0 : index
    %6 = vector.load %arg3[%c0_4, %c0_5] : memref<64x8xbf16, #tpu.memory_space<vmem>>, vector<64x8xbf16>
    %cst_6 = arith.constant dense<0.000000e+00> : vector<256x8xf32>
    %7 = tpu.matmul %5, %6, %cst_6 {dimension_numbers = #tpu.dot_dimension_numbers<[1], [0], [0], [1], [0, 0, 1, 1], [], []>} : vector<256x64xbf16>, vector<64x8xbf16>, vector<256x8xf32> -> vector<256x8xf32>
    %8 = arith.truncf %7 : vector<256x8xf32> to vector<256x8xbf16>
    %c0_7 = arith.constant 0 : index
    %c0_8 = arith.constant 0 : index
    %9 = vector.load %arg4[%c0_7, %c0_8] : memref<256x8xbf16, #tpu.memory_space<vmem>>, vector<256x8xbf16>
    tpu.vector_store %arg4[%c0_7, %c0_8], %8 {strides = array<i32>} : memref<256x8xbf16, #tpu.memory_space<vmem>>, vector<256x8xbf16>,
    return
  }
  func.func @transform_0(%arg0: i32) -> (i32, i32) {
    %c0_i32 = arith.constant 0 : i32
    %c0_i32_0 = arith.constant 0 : i32
    return %arg0, %c0_i32 : i32, i32
  }
  func.func @transform_1(%arg0: i32) -> (i32, i32) {
    %c0_i32 = arith.constant 0 : i32
    %c0_i32_0 = arith.constant 0 : i32
    %c0_i32_1 = arith.constant 0 : i32
    return %c0_i32, %c0_i32_0 : i32, i32
  }
  func.func @transform_2(%arg0: i32) -> (i32, i32) {
    %c0_i32 = arith.constant 0 : i32
    %c0_i32_0 = arith.constant 0 : i32
    %c0_i32_1 = arith.constant 0 : i32
    return %c0_i32, %c0_i32_0 : i32, i32
  }
  func.func @transform_3(%arg0: i32) -> (i32, i32) {
    %c0_i32 = arith.constant 0 : i32
    %c0_i32_0 = arith.constant 0 : i32
    return %arg0, %c0_i32 : i32, i32
  }
}

</mosaic_0001>

<llo_original>
// kernel: density_and_features_forward.1
$region0: #{density_and_features_forward.1}
  #allocation0 [shape = 'u32[]', space=smem, size = 0x4, offset = 0x4, fixed_abs, tag = 'smem constant byte address 0x4 - core index']
  #allocation1 [shape = 'u32[144,128]{1,0:T(1,128)}', space=vmem, size = 0x12000, scoped, tag = 'internal scratch']
  %s0 = inlined_call_operand.vmem [shape: bf16[256,40], index: 0, kind: input, shape index: {}]
  %s1 = inlined_call_operand.vmem [shape: bf16[40,64], index: 1, kind: input, shape index: {}]
  %s2 = inlined_call_operand.vmem [shape: bf16[64,8], index: 2, kind: input, shape index: {}]
  %s3 = inlined_call_operand.vmem [shape: bf16[256,8], index: 3, kind: output, shape index: {}]
  %s4 = sld [smem:[#allocation0]]
  $region22: #{density_and_features_forward.1} parent=0
    _
  %s6 = ssub.s32 1, %s4
  %s7 = scalar_select 0, %s6, %s4
  // Predicated region
  $region2: #{density_and_features_forward.1} parent=0 // pred_check
    _
  $region3: #{density_and_features_forward.1} parent=0 // pred_check_branch
    %9 = sbr.rel (0) target = $region5
  $region4: #{density_and_features_forward.1} parent=0 // pred_region
    _
  $region5: #{density_and_features_forward.1} parent=0 // pred_fallthru
    _
  // Predicated region
  $region6: #{density_and_features_forward.1} parent=0 // pred_check
    _
  $region7: #{density_and_features_forward.1} parent=0 // pred_check_branch
    %11 = sbr.rel (0) target = $region9
  $region8: #{density_and_features_forward.1} parent=0 // pred_region
    _
  $region9: #{density_and_features_forward.1} parent=0 // pred_fallthru
    _
  // Predicated region
  $region10: #{density_and_features_forward.1} parent=0 // pred_check
    _
  $region11: #{density_and_features_forward.1} parent=0 // pred_check_branch
    %13 = sbr.rel (0) target = $region13
  $region12: #{density_and_features_forward.1} parent=0 // pred_region
    _
  $region13: #{density_and_features_forward.1} parent=0 // pred_fallthru
    _
  %v15 = vld [vmem:[%s0] sm:$0xf]
  %v16 = vld [vmem:[%s0 + $0x4] sm:$0xf]
  %v17 = vld [vmem:[%s0 + $0x8] sm:$0xf]
  %v18 = vld [vmem:[%s0 + $0xc] sm:$0xf]
  %v19 = vld [vmem:[%s0 + $0x10] sm:$0xf]
  %v20 = vld [vmem:[%s0 + $0x14] sm:$0xf]
  %v21 = vld [vmem:[%s0 + $0x18] sm:$0xf]
  %v22 = vld [vmem:[%s0 + $0x1c] sm:$0xf]
  %v23 = vld [vmem:[%s0 + $0x20] sm:$0xf]
  %v24 = vld [vmem:[%s0 + $0x24] sm:$0xf]
  %v25 = vld [vmem:[%s0 + $0x28] sm:$0xf]
  %v26 = vld [vmem:[%s0 + $0x2c] sm:$0xf]
  %v27 = vld [vmem:[%s0 + $0x30] sm:$0xf]
  %v28 = vld [vmem:[%s0 + $0x34] sm:$0xf]
  %v29 = vld [vmem:[%s0 + $0x38] sm:$0xf]
  %v30 = vld [vmem:[%s0 + $0x3c] sm:$0xf]
  %v31 = vld [vmem:[%s0 + $0x40] sm:$0xf]
  %v32 = vld [vmem:[%s0 + $0x44] sm:$0xf]
  %v33 = vld [vmem:[%s0 + $0x48] sm:$0xf]
  %v34 = vld [vmem:[%s0 + $0x4c] sm:$0xf]
  %v35 = vld [vmem:[%s0 + $0x50] sm:$0xf]
  %v36 = vld [vmem:[%s0 + $0x54] sm:$0xf]
  %v37 = vld [vmem:[%s0 + $0x58] sm:$0xf]
  %v38 = vld [vmem:[%s0 + $0x5c] sm:$0xf]
  %v39 = vld [vmem:[%s0 + $0x60] sm:$0xf]
  %v40 = vld [vmem:[%s0 + $0x64] sm:$0xf]
  %v41 = vld [vmem:[%s0 + $0x68] sm:$0xf]
  %v42 = vld [vmem:[%s0 + $0x6c] sm:$0xf]
  %v43 = vld [vmem:[%s0 + $0x70] sm:$0xf]
  %v44 = vld [vmem:[%s0 + $0x74] sm:$0xf]
  %v45 = vld [vmem:[%s0 + $0x78] sm:$0xf]
  %v46 = vld [vmem:[%s0 + $0x7c] sm:$0xf]
  %v47 = vld [vmem:[%s1] sm:$0xf]
  %v48 = vld [vmem:[%s1 + $0x4] sm:$0xf]
  %v49 = vld [vmem:[%s1 + $0x8] sm:$0xf]
  %v50 = vld [vmem:[%s1 + $0xc] sm:$0xf]
  %v51 = vld [vmem:[%s1 + $0x10] sm:$0xf]
  %v84 = vunpack.c.l.b16 %v15
  %v85 = vunpack.c.l.b16 %v16
  %v86 = vunpack.c.l.b16 %v17
  %v87 = vunpack.c.l.b16 %v18
  %v88 = vunpack.c.l.b16 %v19
  %v89 = vunpack.c.l.b16 %v20
  %v90 = vunpack.c.l.b16 %v21
  %v91 = vunpack.c.l.b16 %v22
  %v92 = vunpack.c.l.b16 %v23
  %v93 = vunpack.c.l.b16 %v24
  %v94 = vunpack.c.l.b16 %v25
  %v95 = vunpack.c.l.b16 %v26
  %v96 = vunpack.c.l.b16 %v27
  %v97 = vunpack.c.l.b16 %v28
  %v98 = vunpack.c.l.b16 %v29
  %v99 = vunpack.c.l.b16 %v30
  %v100 = vunpack.c.l.b16 %v31
  %v101 = vunpack.c.l.b16 %v32
  %v102 = vunpack.c.l.b16 %v33
  %v103 = vunpack.c.l.b16 %v34
  %v104 = vunpack.c.l.b16 %v35
  %v105 = vunpack.c.l.b16 %v36
  %v106 = vunpack.c.l.b16 %v37
  %v107 = vunpack.c.l.b16 %v38
  %v108 = vunpack.c.l.b16 %v39
  %v109 = vunpack.c.l.b16 %v40
  %v110 = vunpack.c.l.b16 %v41
  %v111 = vunpack.c.l.b16 %v42
  %v112 = vunpack.c.l.b16 %v43
  %v113 = vunpack.c.l.b16 %v44
  %v114 = vunpack.c.l.b16 %v45
  %v115 = vunpack.c.l.b16 %v46
  %v116 = vpack.c.b16 %v85, %v84
  %v117 = vpack.c.b16 %v87, %v86
  %v118 = vpack.c.b16 %v89, %v88
  %v119 = vpack.c.b16 %v91, %v90
  %v120 = vpack.c.b16 %v93, %v92
  %v121 = vpack.c.b16 %v95, %v94
  %v122 = vpack.c.b16 %v97, %v96
  %v123 = vpack.c.b16 %v99, %v98
  %v124 = vpack.c.b16 %v101, %v100
  %v125 = vpack.c.b16 %v103, %v102
  %v126 = vpack.c.b16 %v105, %v104
  %v127 = vpack.c.b16 %v107, %v106
  %v128 = vpack.c.b16 %v109, %v108
  %v129 = vpack.c.b16 %v111, %v110
  %v130 = vpack.c.b16 %v113, %v112
  %v131 = vpack.c.b16 %v115, %v114
  %v137 = vunpack.c.l.b16 %v47
  %v138 = vunpack.c.l.b16 %v48
  %v139 = vunpack.c.l.b16 %v49
  %v140 = vunpack.c.l.b16 %v50
  %v141 = vunpack.c.l.b16 %v51
  %v142 = vpack.c.b16 %v138, %v137
  %v143 = vpack.c.b16 %v140, %v139
  %v144 = vpack.c.b16 %v141, %v141
  %vm147 = vcmask 326656
  %v149 = vsel %vm147, %v116, 0
  %v152 = vsel %vm147, %v117, 0
  %v155 = vsel %vm147, %v118, 0
  %v158 = vsel %vm147, %v119, 0
  %v161 = vsel %vm147, %v120, 0
  %v164 = vsel %vm147, %v121, 0
  %v167 = vsel %vm147, %v122, 0
  %v170 = vsel %vm147, %v123, 0
  %v173 = vsel %vm147, %v124, 0
  %v176 = vsel %vm147, %v125, 0
  %v179 = vsel %vm147, %v126, 0
  %v182 = vsel %vm147, %v127, 0
  %v185 = vsel %vm147, %v128, 0
  %v188 = vsel %vm147, %v129, 0
  %v191 = vsel %vm147, %v130, 0
  %v194 = vsel %vm147, %v131, 0
  %vm196 = vcmask 1043456
  %v198 = vsel %vm196, %v144, 0
  %200 = vmatprep.subr.bf16.mxu0 0
  %201 = vmatpush1.bf16.msra.mxu0 %v142
  %202 = vmatprep.subr.bf16.mxu0 0
  %203 = vmatpush1.bf16.msra.mxu0 %v143
  %204 = vmatprep.subr.bf16.mxu0 0
  %205 = vmatpush1.bf16.msra.mxu0 %v198
  %206 = vmatprep.subr.bf16.mxu0 0
  %207 = vmatpush1.bf16.msra.mxu0 0
  %208 = vmatprep.subr.bf16.mxu0 0
  %209 = vmatpush1.bf16.msra.mxu0 0
  %210 = vmatprep.subr.bf16.mxu0 0
  %211 = vmatpush1.bf16.msra.mxu0 0
  %212 = vmatprep.subr.bf16.mxu0 0
  %213 = vmatpush1.bf16.msra.mxu0 0
  %214 = vmatprep.subr.bf16.mxu0 0
  %215 = vmatpush1.bf16.msra.mxu0 0
  %216 = vmatprep.subr.bf16.mxu0 0
  %217 = vmatpush1.bf16.msra.mxu0 0
  %218 = vmatprep.subr.bf16.mxu0 0
  %219 = vmatpush1.bf16.msra.mxu0 0
  %220 = vmatprep.subr.bf16.mxu0 0
  %221 = vmatpush1.bf16.msra.mxu0 0
  %222 = vmatprep.subr.bf16.mxu0 0
  %223 = vmatpush1.bf16.msra.mxu0 0
  %224 = vmatprep.subr.bf16.mxu0 0
  %225 = vmatpush1.bf16.msra.mxu0 0
  %226 = vmatprep.subr.bf16.mxu0 0
  %227 = vmatpush1.bf16.msra.mxu0 0
  %228 = vmatprep.subr.bf16.mxu0 0
  %229 = vmatpush1.bf16.msra.mxu0 0
  %230 = vmatprep.subr.bf16.mxu0 0
  %231 = vmatpush1.bf16.msra.mxu0 0
  %232 = vmatprep.mubr.bf16.mxu0 0
  %233 = vmatmul.mubr.bf16.gmra.mrb[0].mxu0 %v149
  %v234 = vpop.f32.mrb[0].mxu0
  %v235 = vadd.f32 0.0, %v234
  %v236 = vpop.f32.mrb[0].mxu0
  %v237 = vpop.f32.mrb[0].mxu0
  %v238 = vadd.f32 0.0, %v237
  %v239 = vpop.f32.mrb[0].mxu0
  %240 = vmatprep.mubr.bf16.mxu0 0
  %241 = vmatmul.mubr.bf16.gmra.mrb[0].mxu0 %v152
  %v242 = vpop.f32.mrb[0].mxu0
  %v243 = vadd.f32 0.0, %v242
  %v244 = vpop.f32.mrb[0].mxu0
  %v245 = vpop.f32.mrb[0].mxu0
  %v246 = vadd.f32 0.0, %v245
  %v247 = vpop.f32.mrb[0].mxu0
  %248 = vmatprep.mubr.bf16.mxu0 0
  %249 = vmatmul.mubr.bf16.gmra.mrb[0].mxu0 %v155
  %v250 = vpop.f32.mrb[0].mxu0
  %v251 = vadd.f32 0.0, %v250
  %v252 = vpop.f32.mrb[0].mxu0
  %v253 = vpop.f32.mrb[0].mxu0
  %v254 = vadd.f32 0.0, %v253
  %v255 = vpop.f32.mrb[0].mxu0
  %256 = vmatprep.mubr.bf16.mxu0 0
  %257 = vmatmul.mubr.bf16.gmra.mrb[0].mxu0 %v158
  %v258 = vpop.f32.mrb[0].mxu0
  %v259 = vadd.f32 0.0, %v258
  %v260 = vpop.f32.mrb[0].mxu0
  %v261 = vpop.f32.mrb[0].mxu0
  %v262 = vadd.f32 0.0, %v261
  %v263 = vpop.f32.mrb[0].mxu0
  %264 = vmatprep.mubr.bf16.mxu0 0
  %265 = vmatmul.mubr.bf16.gmra.mrb[0].mxu0 %v161
  %v266 = vpop.f32.mrb[0].mxu0
  %v267 = vadd.f32 0.0, %v266
  %v268 = vpop.f32.mrb[0].mxu0
  %v269 = vpop.f32.mrb[0].mxu0
  %v270 = vadd.f32 0.0, %v269
  %v271 = vpop.f32.mrb[0].mxu0
  %272 = vmatprep.mubr.bf16.mxu0 0
  %273 = vmatmul.mubr.bf16.gmra.mrb[0].mxu0 %v164
  %v274 = vpop.f32.mrb[0].mxu0
  %v275 = vadd.f32 0.0, %v274
  %v276 = vpop.f32.mrb[0].mxu0
  %v277 = vpop.f32.mrb[0].mxu0
  %v278 = vadd.f32 0.0, %v277
  %v279 = vpop.f32.mrb[0].mxu0
  %280 = vmatprep.mubr.bf16.mxu0 0
  %281 = vmatmul.mubr.bf16.gmra.mrb[0].mxu0 %v167
  %v282 = vpop.f32.mrb[0].mxu0
  %v283 = vadd.f32 0.0, %v282
  %v284 = vpop.f32.mrb[0].mxu0
  %v285 = vpop.f32.mrb[0].mxu0
  %v286 = vadd.f32 0.0, %v285
  %v287 = vpop.f32.mrb[0].mxu0
  %288 = vmatprep.mubr.bf16.mxu0 0
  %289 = vmatmul.mubr.bf16.gmra.mrb[0].mxu0 %v170
  %v290 = vpop.f32.mrb[0].mxu0
  %v291 = vadd.f32 0.0, %v290
  %v292 = vpop.f32.mrb[0].mxu0
  %v293 = vpop.f32.mrb[0].mxu0
  %v294 = vadd.f32 0.0, %v293
  %v295 = vpop.f32.mrb[0].mxu0
  %296 = vmatprep.mubr.bf16.mxu0 0
  %297 = vmatmul.mubr.bf16.gmra.mrb[0].mxu0 %v173
  %v298 = vpop.f32.mrb[0].mxu0
  %v299 = vadd.f32 0.0, %v298
  %v300 = vpop.f32.mrb[0].mxu0
  %v301 = vpop.f32.mrb[0].mxu0
  %v302 = vadd.f32 0.0, %v301
  %v303 = vpop.f32.mrb[0].mxu0
  %304 = vmatprep.mubr.bf16.mxu0 0
  %305 = vmatmul.mubr.bf16.gmra.mrb[0].mxu0 %v176
  %v306 = vpop.f32.mrb[0].mxu0
  %v307 = vadd.f32 0.0, %v306
  %v308 = vpop.f32.mrb[0].mxu0
  %v309 = vpop.f32.mrb[0].mxu0
  %v310 = vadd.f32 0.0, %v309
  %v311 = vpop.f32.mrb[0].mxu0
  %312 = vmatprep.mubr.bf16.mxu0 0
  %313 = vmatmul.mubr.bf16.gmra.mrb[0].mxu0 %v179
  %v314 = vpop.f32.mrb[0].mxu0
  %v315 = vadd.f32 0.0, %v314
  %v316 = vpop.f32.mrb[0].mxu0
  %v317 = vpop.f32.mrb[0].mxu0
  %v318 = vadd.f32 0.0, %v317
  %v319 = vpop.f32.mrb[0].mxu0
  %320 = vmatprep.mubr.bf16.mxu0 0
  %321 = vmatmul.mubr.bf16.gmra.mrb[0].mxu0 %v182
  %v322 = vpop.f32.mrb[0].mxu0
  %v323 = vadd.f32 0.0, %v322
  %v324 = vpop.f32.mrb[0].mxu0
  %v325 = vpop.f32.mrb[0].mxu0
  %v326 = vadd.f32 0.0, %v325
  %v327 = vpop.f32.mrb[0].mxu0
  %328 = vmatprep.mubr.bf16.mxu0 0
  %329 = vmatmul.mubr.bf16.gmra.mrb[0].mxu0 %v185
  %v330 = vpop.f32.mrb[0].mxu0
  %v331 = vadd.f32 0.0, %v330
  %v332 = vpop.f32.mrb[0].mxu0
  %v333 = vpop.f32.mrb[0].mxu0
  %v334 = vadd.f32 0.0, %v333
  %v335 = vpop.f32.mrb[0].mxu0
  %336 = vmatprep.mubr.bf16.mxu0 0
  %337 = vmatmul.mubr.bf16.gmra.mrb[0].mxu0 %v188
  %v338 = vpop.f32.mrb[0].mxu0
  %v339 = vadd.f32 0.0, %v338
  %v340 = vpop.f32.mrb[0].mxu0
  %v341 = vpop.f32.mrb[0].mxu0
  %v342 = vadd.f32 0.0, %v341
  %v343 = vpop.f32.mrb[0].mxu0
  %344 = vmatprep.mubr.bf16.mxu0 0
  %345 = vmatmul.mubr.bf16.gmra.mrb[0].mxu0 %v191
  %v346 = vpop.f32.mrb[0].mxu0
  %v347 = vadd.f32 0.0, %v346
  %v348 = vpop.f32.mrb[0].mxu0
  %v349 = vpop.f32.mrb[0].mxu0
  %v350 = vadd.f32 0.0, %v349
  %v351 = vpop.f32.mrb[0].mxu0
  %352 = vmatprep.mubr.bf16.mxu0 0
  %353 = vmatmul.mubr.bf16.gmra.mrb[0].mxu0 %v194
  %v354 = vpop.f32.mrb[0].mxu0
  %v355 = vadd.f32 0.0, %v354
  %v356 = vpop.f32.mrb[0].mxu0
  %v357 = vpop.f32.mrb[0].mxu0
  %v358 = vadd.f32 0.0, %v357
  %v359 = vpop.f32.mrb[0].mxu0
  %360 = vdwg.mxu0
  %v361 = vmax.f32 %v235, 0.0
  %v362 = vmax.f32 %v238, 0.0
  %v363 = vmax.f32 %v243, 0.0
  %v364 = vmax.f32 %v246, 0.0
  %v365 = vmax.f32 %v251, 0.0
  %v366 = vmax.f32 %v254, 0.0
  %v367 = vmax.f32 %v259, 0.0
  %v368 = vmax.f32 %v262, 0.0
  %v369 = vmax.f32 %v267, 0.0
  %v370 = vmax.f32 %v270, 0.0
  %v371 = vmax.f32 %v275, 0.0
  %v372 = vmax.f32 %v278, 0.0
  %v373 = vmax.f32 %v283, 0.0
  %v374 = vmax.f32 %v286, 0.0
  %v375 = vmax.f32 %v291, 0.0
  %v376 = vmax.f32 %v294, 0.0
  %v377 = vmax.f32 %v299, 0.0
  %v378 = vmax.f32 %v302, 0.0
  %v379 = vmax.f32 %v307, 0.0
  %v380 = vmax.f32 %v310, 0.0
  %v381 = vmax.f32 %v315, 0.0
  %v382 = vmax.f32 %v318, 0.0
  %v383 = vmax.f32 %v323, 0.0
  %v384 = vmax.f32 %v326, 0.0
  %v385 = vmax.f32 %v331, 0.0
  %v386 = vmax.f32 %v334, 0.0
  %v387 = vmax.f32 %v339, 0.0
  %v388 = vmax.f32 %v342, 0.0
  %v389 = vmax.f32 %v347, 0.0
  %v390 = vmax.f32 %v350, 0.0
  %v391 = vmax.f32 %v355, 0.0
  %v392 = vmax.f32 %v358, 0.0
  %v393 = vpack.c.bf16 %v362, %v361
  %v394 = vpack.c.bf16 %v364, %v363
  %v395 = vpack.c.bf16 %v366, %v365
  %v396 = vpack.c.bf16 %v368, %v367
  %v397 = vpack.c.bf16 %v370, %v369
  %v398 = vpack.c.bf16 %v372, %v371
  %v399 = vpack.c.bf16 %v374, %v373
  %v400 = vpack.c.bf16 %v376, %v375
  %v401 = vpack.c.bf16 %v378, %v377
  %v402 = vpack.c.bf16 %v380, %v379
  %v403 = vpack.c.bf16 %v382, %v381
  %v404 = vpack.c.bf16 %v384, %v383
  %v405 = vpack.c.bf16 %v386, %v385
  %v406 = vpack.c.bf16 %v388, %v387
  %v407 = vpack.c.bf16 %v390, %v389
  %v408 = vpack.c.bf16 %v392, %v391
  %v409 = vld [vmem:[%s2] sm:$0xf]
  %v410 = vld [vmem:[%s2 + $0x4] sm:$0xf]
  %v411 = vld [vmem:[%s2 + $0x8] sm:$0xf]
  %v412 = vld [vmem:[%s2 + $0xc] sm:$0xf]
  %v413 = vld [vmem:[%s2 + $0x10] sm:$0xf]
  %v414 = vld [vmem:[%s2 + $0x14] sm:$0xf]
  %v415 = vld [vmem:[%s2 + $0x18] sm:$0xf]
  %v416 = vld [vmem:[%s2 + $0x1c] sm:$0xf]
  %v425 = vunpack.c.l.b16 %v409
  %v426 = vunpack.c.l.b16 %v410
  %v427 = vunpack.c.l.b16 %v411
  %v428 = vunpack.c.l.b16 %v412
  %v429 = vunpack.c.l.b16 %v413
  %v430 = vunpack.c.l.b16 %v414
  %v431 = vunpack.c.l.b16 %v415
  %v432 = vunpack.c.l.b16 %v416
  %v433 = vpack.c.b16 %v426, %v425
  %v434 = vpack.c.b16 %v428, %v427
  %v435 = vpack.c.b16 %v430, %v429
  %v436 = vpack.c.b16 %v432, %v431
  %vm441 = vcmask 523264
  %v443 = vsel %vm441, %v393, 0
  %v446 = vsel %vm441, %v394, 0
  %v449 = vsel %vm441, %v395, 0
  %v452 = vsel %vm441, %v396, 0
  %v455 = vsel %vm441, %v397, 0
  %v458 = vsel %vm441, %v398, 0
  %v461 = vsel %vm441, %v399, 0
  %v464 = vsel %vm441, %v400, 0
  %v467 = vsel %vm441, %v401, 0
  %v470 = vsel %vm441, %v402, 0
  %v473 = vsel %vm441, %v403, 0
  %v476 = vsel %vm441, %v404, 0
  %v479 = vsel %vm441, %v405, 0
  %v482 = vsel %vm441, %v406, 0
  %v485 = vsel %vm441, %v407, 0
  %v488 = vsel %vm441, %v408, 0
  %490 = vmatprep.subr.bf16.mxu0 0
  %491 = vmatpush1.bf16.msra.mxu0 %v433
  %492 = vmatprep.subr.bf16.mxu0 0
  %493 = vmatpush1.bf16.msra.mxu0 %v434
  %494 = vmatprep.subr.bf16.mxu0 0
  %495 = vmatpush1.bf16.msra.mxu0 %v435
  %496 = vmatprep.subr.bf16.mxu0 0
  %497 = vmatpush1.bf16.msra.mxu0 %v436
  %498 = vmatprep.subr.bf16.mxu0 0
  %499 = vmatpush1.bf16.msra.mxu0 0
  %500 = vmatprep.subr.bf16.mxu0 0
  %501 = vmatpush1.bf16.msra.mxu0 0
  %502 = vmatprep.subr.bf16.mxu0 0
  %503 = vmatpush1.bf16.msra.mxu0 0
  %504 = vmatprep.subr.bf16.mxu0 0
  %505 = vmatpush1.bf16.msra.mxu0 0
  %506 = vmatprep.subr.bf16.mxu0 0
  %507 = vmatpush1.bf16.msra.mxu0 0
  %508 = vmatprep.subr.bf16.mxu0 0
  %509 = vmatpush1.bf16.msra.mxu0 0
  %510 = vmatprep.subr.bf16.mxu0 0
  %511 = vmatpush1.bf16.msra.mxu0 0
  %512 = vmatprep.subr.bf16.mxu0 0
  %513 = vmatpush1.bf16.msra.mxu0 0
  %514 = vmatprep.subr.bf16.mxu0 0
  %515 = vmatpush1.bf16.msra.mxu0 0
  %516 = vmatprep.subr.bf16.mxu0 0
  %517 = vmatpush1.bf16.msra.mxu0 0
  %518 = vmatprep.subr.bf16.mxu0 0
  %519 = vmatpush1.bf16.msra.mxu0 0
  %520 = vmatprep.subr.bf16.mxu0 0
  %521 = vmatpush1.bf16.msra.mxu0 0
  %522 = vmatprep.mubr.bf16.mxu0 0
  %523 = vmatmul.mubr.bf16.gmra.mrb[0].mxu0 %v443
  %v524 = vpop.f32.mrb[0].mxu0
  %v525 = vadd.f32 0.0, %v524
  %v526 = vpop.f32.mrb[0].mxu0
  %v527 = vpop.f32.mrb[0].mxu0
  %v528 = vadd.f32 0.0, %v527
  %v529 = vpop.f32.mrb[0].mxu0
  %530 = vmatprep.mubr.bf16.mxu0 0
  %531 = vmatmul.mubr.bf16.gmra.mrb[0].mxu0 %v446
  %v532 = vpop.f32.mrb[0].mxu0
  %v533 = vadd.f32 0.0, %v532
  %v534 = vpop.f32.mrb[0].mxu0
  %v535 = vpop.f32.mrb[0].mxu0
  %v536 = vadd.f32 0.0, %v535
  %v537 = vpop.f32.mrb[0].mxu0
  %538 = vmatprep.mubr.bf16.mxu0 0
  %539 = vmatmul.mubr.bf16.gmra.mrb[0].mxu0 %v449
  %v540 = vpop.f32.mrb[0].mxu0
  %v541 = vadd.f32 0.0, %v540
  %v542 = vpop.f32.mrb[0].mxu0
  %v543 = vpop.f32.mrb[0].mxu0
  %v544 = vadd.f32 0.0, %v543
  %v545 = vpop.f32.mrb[0].mxu0
  %546 = vmatprep.mubr.bf16.mxu0 0
  %547 = vmatmul.mubr.bf16.gmra.mrb[0].mxu0 %v452
  %v548 = vpop.f32.mrb[0].mxu0
  %v549 = vadd.f32 0.0, %v548
  %v550 = vpop.f32.mrb[0].mxu0
  %v551 = vpop.f32.mrb[0].mxu0
  %v552 = vadd.f32 0.0, %v551
  %v553 = vpop.f32.mrb[0].mxu0
  %554 = vmatprep.mubr.bf16.mxu0 0
  %555 = vmatmul.mubr.bf16.gmra.mrb[0].mxu0 %v455
  %v556 = vpop.f32.mrb[0].mxu0
  %v557 = vadd.f32 0.0, %v556
  %v558 = vpop.f32.mrb[0].mxu0
  %v559 = vpop.f32.mrb[0].mxu0
  %v560 = vadd.f32 0.0, %v559
  %v561 = vpop.f32.mrb[0].mxu0
  %562 = vmatprep.mubr.bf16.mxu0 0
  %563 = vmatmul.mubr.bf16.gmra.mrb[0].mxu0 %v458
  %v564 = vpop.f32.mrb[0].mxu0
  %v565 = vadd.f32 0.0, %v564
  %v566 = vpop.f32.mrb[0].mxu0
  %v567 = vpop.f32.mrb[0].mxu0
  %v568 = vadd.f32 0.0, %v567
  %v569 = vpop.f32.mrb[0].mxu0
  %570 = vmatprep.mubr.bf16.mxu0 0
  %571 = vmatmul.mubr.bf16.gmra.mrb[0].mxu0 %v461
  %v572 = vpop.f32.mrb[0].mxu0
  %v573 = vadd.f32 0.0, %v572
  %v574 = vpop.f32.mrb[0].mxu0
  %v575 = vpop.f32.mrb[0].mxu0
  %v576 = vadd.f32 0.0, %v575
  %v577 = vpop.f32.mrb[0].mxu0
  %578 = vmatprep.mubr.bf16.mxu0 0
  %579 = vmatmul.mubr.bf16.gmra.mrb[0].mxu0 %v464
  %v580 = vpop.f32.mrb[0].mxu0
  %v581 = vadd.f32 0.0, %v580
  %v582 = vpop.f32.mrb[0].mxu0
  %v583 = vpop.f32.mrb[0].mxu0
  %v584 = vadd.f32 0.0, %v583
  %v585 = vpop.f32.mrb[0].mxu0
  %586 = vmatprep.mubr.bf16.mxu0 0
  %587 = vmatmul.mubr.bf16.gmra.mrb[0].mxu0 %v467
  %v588 = vpop.f32.mrb[0].mxu0
  %v589 = vadd.f32 0.0, %v588
  %v590 = vpop.f32.mrb[0].mxu0
  %v591 = vpop.f32.mrb[0].mxu0
  %v592 = vadd.f32 0.0, %v591
  %v593 = vpop.f32.mrb[0].mxu0
  %594 = vmatprep.mubr.bf16.mxu0 0
  %595 = vmatmul.mubr.bf16.gmra.mrb[0].mxu0 %v470
  %v596 = vpop.f32.mrb[0].mxu0
  %v597 = vadd.f32 0.0, %v596
  %v598 = vpop.f32.mrb[0].mxu0
  %v599 = vpop.f32.mrb[0].mxu0
  %v600 = vadd.f32 0.0, %v599
  %v601 = vpop.f32.mrb[0].mxu0
  %602 = vmatprep.mubr.bf16.mxu0 0
  %603 = vmatmul.mubr.bf16.gmra.mrb[0].mxu0 %v473
  %v604 = vpop.f32.mrb[0].mxu0
  %v605 = vadd.f32 0.0, %v604
  %v606 = vpop.f32.mrb[0].mxu0
  %v607 = vpop.f32.mrb[0].mxu0
  %v608 = vadd.f32 0.0, %v607
  %v609 = vpop.f32.mrb[0].mxu0
  %610 = vmatprep.mubr.bf16.mxu0 0
  %611 = vmatmul.mubr.bf16.gmra.mrb[0].mxu0 %v476
  %v612 = vpop.f32.mrb[0].mxu0
  %v613 = vadd.f32 0.0, %v612
  %v614 = vpop.f32.mrb[0].mxu0
  %v615 = vpop.f32.mrb[0].mxu0
  %v616 = vadd.f32 0.0, %v615
  %v617 = vpop.f32.mrb[0].mxu0
  %618 = vmatprep.mubr.bf16.mxu0 0
  %619 = vmatmul.mubr.bf16.gmra.mrb[0].mxu0 %v479
  %v620 = vpop.f32.mrb[0].mxu0
  %v621 = vadd.f32 0.0, %v620
  %v622 = vpop.f32.mrb[0].mxu0
  %v623 = vpop.f32.mrb[0].mxu0
  %v624 = vadd.f32 0.0, %v623
  %v625 = vpop.f32.mrb[0].mxu0
  %626 = vmatprep.mubr.bf16.mxu0 0
  %627 = vmatmul.mubr.bf16.gmra.mrb[0].mxu0 %v482
  %v628 = vpop.f32.mrb[0].mxu0
  %v629 = vadd.f32 0.0, %v628
  %v630 = vpop.f32.mrb[0].mxu0
  %v631 = vpop.f32.mrb[0].mxu0
  %v632 = vadd.f32 0.0, %v631
  %v633 = vpop.f32.mrb[0].mxu0
  %634 = vmatprep.mubr.bf16.mxu0 0
  %635 = vmatmul.mubr.bf16.gmra.mrb[0].mxu0 %v485
  %v636 = vpop.f32.mrb[0].mxu0
  %v637 = vadd.f32 0.0, %v636
  %v638 = vpop.f32.mrb[0].mxu0
  %v639 = vpop.f32.mrb[0].mxu0
  %v640 = vadd.f32 0.0, %v639
  %v641 = vpop.f32.mrb[0].mxu0
  %642 = vmatprep.mubr.bf16.mxu0 0
  %643 = vmatmul.mubr.bf16.gmra.mrb[0].mxu0 %v488
  %v644 = vpop.f32.mrb[0].mxu0
  %v645 = vadd.f32 0.0, %v644
  %v646 = vpop.f32.mrb[0].mxu0
  %v647 = vpop.f32.mrb[0].mxu0
  %v648 = vadd.f32 0.0, %v647
  %v649 = vpop.f32.mrb[0].mxu0
  %650 = vdwg.mxu0
  %v651 = vpack.c.bf16 %v528, %v525
  %v652 = vpack.c.bf16 %v536, %v533
  %v653 = vpack.c.bf16 %v544, %v541
  %v654 = vpack.c.bf16 %v552, %v549
  %v655 = vpack.c.bf16 %v560, %v557
  %v656 = vpack.c.bf16 %v568, %v565
  %v657 = vpack.c.bf16 %v576, %v573
  %v658 = vpack.c.bf16 %v584, %v581
  %v659 = vpack.c.bf16 %v592, %v589
  %v660 = vpack.c.bf16 %v600, %v597
  %v661 = vpack.c.bf16 %v608, %v605
  %v662 = vpack.c.bf16 %v616, %v613
  %v663 = vpack.c.bf16 %v624, %v621
  %v664 = vpack.c.bf16 %v632, %v629
  %v665 = vpack.c.bf16 %v640, %v637
  %v666 = vpack.c.bf16 %v648, %v645
  %v683 = vunpack.c.l.b16 %v651
  %v684 = vunpack.c.h.b16 %v651
  %v685 = vunpack.c.l.b16 %v652
  %v686 = vunpack.c.h.b16 %v652
  %v687 = vunpack.c.l.b16 %v653
  %v688 = vunpack.c.h.b16 %v653
  %v689 = vunpack.c.l.b16 %v654
  %v690 = vunpack.c.h.b16 %v654
  %v691 = vunpack.c.l.b16 %v655
  %v692 = vunpack.c.h.b16 %v655
  %v693 = vunpack.c.l.b16 %v656
  %v694 = vunpack.c.h.b16 %v656
  %v695 = vunpack.c.l.b16 %v657
  %v696 = vunpack.c.h.b16 %v657
  %v697 = vunpack.c.l.b16 %v658
  %v698 = vunpack.c.h.b16 %v658
  %v699 = vunpack.c.l.b16 %v659
  %v700 = vunpack.c.h.b16 %v659
  %v701 = vunpack.c.l.b16 %v660
  %v702 = vunpack.c.h.b16 %v660
  %v703 = vunpack.c.l.b16 %v661
  %v704 = vunpack.c.h.b16 %v661
  %v705 = vunpack.c.l.b16 %v662
  %v706 = vunpack.c.h.b16 %v662
  %v707 = vunpack.c.l.b16 %v663
  %v708 = vunpack.c.h.b16 %v663
  %v709 = vunpack.c.l.b16 %v664
  %v710 = vunpack.c.h.b16 %v664
  %v711 = vunpack.c.l.b16 %v665
  %v712 = vunpack.c.h.b16 %v665
  %v713 = vunpack.c.l.b16 %v666
  %v714 = vunpack.c.h.b16 %v666
  %v715 = vpack.c.b16 %v683, %v683
  %v716 = vpack.c.b16 %v684, %v684
  %v717 = vpack.c.b16 %v685, %v685
  %v718 = vpack.c.b16 %v686, %v686
  %v719 = vpack.c.b16 %v687, %v687
  %v720 = vpack.c.b16 %v688, %v688
  %v721 = vpack.c.b16 %v689, %v689
  %v722 = vpack.c.b16 %v690, %v690
  %v723 = vpack.c.b16 %v691, %v691
  %v724 = vpack.c.b16 %v692, %v692
  %v725 = vpack.c.b16 %v693, %v693
  %v726 = vpack.c.b16 %v694, %v694
  %v727 = vpack.c.b16 %v695, %v695
  %v728 = vpack.c.b16 %v696, %v696
  %v729 = vpack.c.b16 %v697, %v697
  %v730 = vpack.c.b16 %v698, %v698
  %v731 = vpack.c.b16 %v699, %v699
  %v732 = vpack.c.b16 %v700, %v700
  %v733 = vpack.c.b16 %v701, %v701
  %v734 = vpack.c.b16 %v702, %v702
  %v735 = vpack.c.b16 %v703, %v703
  %v736 = vpack.c.b16 %v704, %v704
  %v737 = vpack.c.b16 %v705, %v705
  %v738 = vpack.c.b16 %v706, %v706
  %v739 = vpack.c.b16 %v707, %v707
  %v740 = vpack.c.b16 %v708, %v708
  %v741 = vpack.c.b16 %v709, %v709
  %v742 = vpack.c.b16 %v710, %v710
  %v743 = vpack.c.b16 %v711, %v711
  %v744 = vpack.c.b16 %v712, %v712
  %v745 = vpack.c.b16 %v713, %v713
  %v746 = vpack.c.b16 %v714, %v714
  %vm779 = vcmask 60416
  %780 = vst.msk [vmem:[%s3] sm:$0xf] %vm779, %v715
  %781 = vst.msk [vmem:[%s3 + $0x4] sm:$0xf] %vm779, %v716
  %782 = vst.msk [vmem:[%s3 + $0x8] sm:$0xf] %vm779, %v717
  %783 = vst.msk [vmem:[%s3 + $0xc] sm:$0xf] %vm779, %v718
  %784 = vst.msk [vmem:[%s3 + $0x10] sm:$0xf] %vm779, %v719
  %785 = vst.msk [vmem:[%s3 + $0x14] sm:$0xf] %vm779, %v720
  %786 = vst.msk [vmem:[%s3 + $0x18] sm:$0xf] %vm779, %v721
  %787 = vst.msk [vmem:[%s3 + $0x1c] sm:$0xf] %vm779, %v722
  %788 = vst.msk [vmem:[%s3 + $0x20] sm:$0xf] %vm779, %v723
  %789 = vst.msk [vmem:[%s3 + $0x24] sm:$0xf] %vm779, %v724
  %790 = vst.msk [vmem:[%s3 + $0x28] sm:$0xf] %vm779, %v725
  %791 = vst.msk [vmem:[%s3 + $0x2c] sm:$0xf] %vm779, %v726
  %792 = vst.msk [vmem:[%s3 + $0x30] sm:$0xf] %vm779, %v727
  %793 = vst.msk [vmem:[%s3 + $0x34] sm:$0xf] %vm779, %v728
  %794 = vst.msk [vmem:[%s3 + $0x38] sm:$0xf] %vm779, %v729
  %795 = vst.msk [vmem:[%s3 + $0x3c] sm:$0xf] %vm779, %v730
  %796 = vst.msk [vmem:[%s3 + $0x40] sm:$0xf] %vm779, %v731
  %797 = vst.msk [vmem:[%s3 + $0x44] sm:$0xf] %vm779, %v732
  %798 = vst.msk [vmem:[%s3 + $0x48] sm:$0xf] %vm779, %v733
  %799 = vst.msk [vmem:[%s3 + $0x4c] sm:$0xf] %vm779, %v734
  %800 = vst.msk [vmem:[%s3 + $0x50] sm:$0xf] %vm779, %v735
  %801 = vst.msk [vmem:[%s3 + $0x54] sm:$0xf] %vm779, %v736
  %802 = vst.msk [vmem:[%s3 + $0x58] sm:$0xf] %vm779, %v737
  %803 = vst.msk [vmem:[%s3 + $0x5c] sm:$0xf] %vm779, %v738
  %804 = vst.msk [vmem:[%s3 + $0x60] sm:$0xf] %vm779, %v739
  %805 = vst.msk [vmem:[%s3 + $0x64] sm:$0xf] %vm779, %v740
  %806 = vst.msk [vmem:[%s3 + $0x68] sm:$0xf] %vm779, %v741
  %807 = vst.msk [vmem:[%s3 + $0x6c] sm:$0xf] %vm779, %v742
  %808 = vst.msk [vmem:[%s3 + $0x70] sm:$0xf] %vm779, %v743
  %809 = vst.msk [vmem:[%s3 + $0x74] sm:$0xf] %vm779, %v744
  %810 = vst.msk [vmem:[%s3 + $0x78] sm:$0xf] %vm779, %v745
  %811 = vst.msk [vmem:[%s3 + $0x7c] sm:$0xf] %vm779, %v746
  // Predicated region
  $region14: #{density_and_features_forward.1} parent=0 // pred_check
    _
  $region15: #{density_and_features_forward.1} parent=0 // pred_check_branch
    %813 = sbr.rel (0) target = $region17
  $region16: #{density_and_features_forward.1} parent=0 // pred_region
    _
  $region17: #{density_and_features_forward.1} parent=0 // pred_fallthru
    _
  // Predicated region
  $region18: #{density_and_features_forward.1} parent=0 // pred_check
    _
  $region19: #{density_and_features_forward.1} parent=0 // pred_check_branch
    %815 = sbr.rel (0) target = $region21
  $region20: #{density_and_features_forward.1} parent=0 // pred_region
    _
  $region21: #{density_and_features_forward.1} parent=0 // pred_fallthru
    _

</llo_original>
